<compile_context>
chip_gen: v6e
topology: v6e:2x2x1
jax: 0.10.0
libtpu: 0.0.40
codegen_flags: <defaults>
</compile_context>

<pallas_src>
import jax
import jax.numpy as jnp
from jax.experimental import pallas as pl
from jax.experimental.pallas import tpu as pltpu


def _round_up(a, b):
    return ((a + b - 1) // b) * b


_TM_MAX = 256              # output-row tile of adj (sublane axis)
_TK_MAX = 512              # reduction tile over graph nodes (lane axis of adj / rows of x)
_XW_CACHE_BYTES_MAX = 8 << 20   # VMEM budget for the cached x@W^T intermediate


# ---------------- Pallas kernel factory ----------------

def _make_gcn_kernel(use_img: bool, use_cache: bool):
    """Fused GCN layer: acc += adj_tile @ (x_tile @ W^T); finalize with (+img) ReLU.

    use_cache: compute x@W^T only on the first row tile (i == 0), keep it in a VMEM
    scratch, reuse for all later row tiles (needs sequential grid on one core).
    """

    def kernel(*refs):
        if use_img:
            adj_ref, x_ref, wt_ref, img_ref, o_ref, *scratch = refs
        else:
            adj_ref, x_ref, wt_ref, o_ref, *scratch = refs
            img_ref = None
        if use_cache:
            acc_ref, xw_ref = scratch
        else:
            (acc_ref,) = scratch

        i = pl.program_id(0)
        k = pl.program_id(1)

        @pl.when(k == 0)
        def _():
            acc_ref[...] = jnp.zeros_like(acc_ref)

        if use_cache:
            tk = adj_ref.shape[1]
            off = pl.multiple_of(k * tk, tk)

            @pl.when(i == 0)
            def _():
                xw = jnp.dot(x_ref[...], wt_ref[...],
                             preferred_element_type=jnp.float32)
                xw_ref[pl.ds(off, tk), :] = xw.astype(xw_ref.dtype)

            xw_k = xw_ref[pl.ds(off, tk), :]
        else:
            xw_k = jnp.dot(x_ref[...], wt_ref[...],
                           preferred_element_type=jnp.float32
                           ).astype(adj_ref.dtype)

        acc_ref[...] += jnp.dot(adj_ref[...], xw_k,
                                preferred_element_type=jnp.float32)

        @pl.when(k == pl.num_programs(1) - 1)
        def _():
            h = acc_ref[...]
            if use_img:
                h = h + img_ref[...].astype(jnp.float32)
            o_ref[...] = jnp.maximum(h, 0.0).astype(o_ref.dtype)

    return kernel


# ---------------- Wrapper: one fused GCN layer ----------------

def gcn_layer(x, adj, wt, img_feat=None, *, compute_dtype=jnp.bfloat16,
              out_dtype=jnp.float32, tm_max=_TM_MAX, tk_max=_TK_MAX):
    """relu(adj @ (x @ wt) [+ img_feat]) as a tiled Pallas TPU kernel.

    x        : [N, F_in]
    adj      : [N, N]
    wt       : [F_in, F_out]   (already-transposed weight, i.e. W^T)
    img_feat : optional [N, F_out] residual
    """
    n, f_in = x.shape
    f_out = wt.shape[1]
    cdt = jnp.dtype(compute_dtype)

    # lane-dense feature padding (multiples of 128)
    f_in_p = _round_up(f_in, 128)
    f_out_p = _round_up(f_out, 128)

    # row tile (sublane axis): multiple of 8, bounded so acc/out/img blocks stay small
    tm_budget = max(8, ((2 << 20) // max(1, f_out_p * 4)) // 8 * 8)
    tm = min(tm_max, _round_up(n, 8), tm_budget)
    # reduction tile (lane axis of adj): multiple of 128, bounded so the (tk x F_in)
    # x tile stays within a comfortable double-buffered VMEM budget
    tk_budget = max(128, ((4 << 20) // max(1, f_in_p * cdt.itemsize)) // 128 * 128)
    tk = min(tk_max, _round_up(n, 128), tk_budget)

    n_rows = _round_up(n, tm)
    n_cols = _round_up(n, tk)
    grid = (n_rows // tm, n_cols // tk)

    # Cache the x@W^T intermediate in VMEM when it fits and there is >1 row tile.
    use_cache = (grid[0] > 1 and
                 n_cols * f_out_p * cdt.itemsize <= _XW_CACHE_BYTES_MAX)
    use_img = img_feat is not None

    # zero-padding is neutral for the matmuls; padded rows/cols are sliced off below
    adj_p = jnp.pad(adj.astype(compute_dtype),
                    ((0, n_rows - n), (0, n_cols - n)))
    x_p = jnp.pad(x.astype(compute_dtype),
                  ((0, n_cols - n), (0, f_in_p - f_in)))
    wt_p = jnp.pad(wt.astype(compute_dtype),
                   ((0, f_in_p - f_in), (0, f_out_p - f_out)))

    if use_cache:
        # Only fetch x's k-tile while filling the cache (i == 0); afterwards the block
        # index stays constant, so Pallas issues no further DMA for x.
        x_index_map = lambda i, k: (jnp.where(i == 0, k, 0), 0)
    else:
        x_index_map = lambda i, k: (k, 0)

    in_specs = [
        pl.BlockSpec((tm, tk), lambda i, k: (i, k)),            # adj tile
        pl.BlockSpec((tk, f_in_p), x_index_map),                # x rows (k-tile)
        pl.BlockSpec((f_in_p, f_out_p), lambda i, k: (0, 0)),   # W^T (VMEM-resident)
    ]
    args = [adj_p, x_p, wt_p]
    if use_img:
        img_p = jnp.pad(img_feat.astype(jnp.float32),
                        ((0, n_rows - n), (0, f_out_p - f_out)))
        in_specs.append(pl.BlockSpec((tm, f_out_p), lambda i, k: (i, 0)))
        args.append(img_p)

    scratch_shapes = [pltpu.VMEM((tm, f_out_p), jnp.float32)]
    if use_cache:
        scratch_shapes.append(pltpu.VMEM((n_cols, f_out_p), cdt))

    # The cached path requires strictly sequential grid traversal on one core (the
    # i == 0 pass fills the cache used by later row tiles).  The kernel is HBM-bound
    # on adj, so giving up megacore row-sharding costs ~nothing.
    if use_cache:
        dim_sems = ("arbitrary", "arbitrary")
    else:
        dim_sems = ("parallel", "arbitrary")

    xw_row_tiles = 1 if use_cache else grid[0]
    flops = int(2 * n_rows * n_cols * f_out_p                       # adj @ xw
                + 2 * xw_row_tiles * n_cols * f_in_p * f_out_p)     # x @ W^T
    bytes_accessed = int(n_rows * n_cols * cdt.itemsize                    # adj
                         + xw_row_tiles * n_cols * f_in_p * cdt.itemsize   # x
                         + f_in_p * f_out_p * cdt.itemsize                 # W^T
                         + n_rows * f_out_p * 4                            # output
                         + (n_rows * f_out_p * 4 if use_img else 0))

    out = pl.pallas_call(
        _make_gcn_kernel(use_img, use_cache),
        out_shape=jax.ShapeDtypeStruct((n_rows, f_out_p), out_dtype),
        grid_spec=pltpu.PrefetchScalarGridSpec(
            num_scalar_prefetch=0,
            grid=grid,
            in_specs=in_specs,
            out_specs=pl.BlockSpec((tm, f_out_p), lambda i, k: (i, 0)),
            scratch_shapes=scratch_shapes,
        ),
        compiler_params=pltpu.CompilerParams(dimension_semantics=dim_sems),
        cost_estimate=pl.CostEstimate(flops=flops, transcendentals=0,
                                      bytes_accessed=bytes_accessed),
    )(*args)

    return out[:n, :f_out]


# ---------------- Module wrapper ----------------

class GCNIPallas:
    def __init__(self, nfeat, nhid, nclass, n_layers=1, dropout=0.5,
                 compute_dtype=jnp.bfloat16, key=None):
        self.n_layers = n_layers
        self.compute_dtype = compute_dtype
        key = jax.random.PRNGKey(42) if key is None else key
        k1, k2 = jax.random.split(key)
        # nn.Linear(in, out, bias=False): weight [out, in], uniform(-1/sqrt(in), 1/sqrt(in))
        b1 = 1.0 / (nfeat ** 0.5)
        b2 = 1.0 / (nhid ** 0.5)
        self.w1 = jax.random.uniform(k1, (nhid, nfeat), jnp.float32, -b1, b1)
        self.w2 = jax.random.uniform(k2, (nclass, nhid), jnp.float32, -b2, b2)
        # pre-transposed weights: avoid any in-kernel transpose
        self.w1t = jnp.asarray(self.w1.T)
        self.w2t = jnp.asarray(self.w2.T)
        # TODO(synk): self.linear (nclass->nclass) from __init__ is never used in forward; omitted.
        # TODO(synk): nn.Dropout implemented as identity (eval-mode semantics).

    def __call__(self, x, adj, img_feat):
        h = gcn_layer(x, adj, self.w1t, img_feat,
                      compute_dtype=self.compute_dtype)
        if self.n_layers == 1:
            return h
        return gcn_layer(h, adj, self.w2t, None,
                         compute_dtype=self.compute_dtype)


# ---------------- Pure-JAX reference ----------------

def gcni_ref(x, adj, img_feat, w1, w2, n_layers):
    h = jnp.maximum(adj @ (x @ w1.T) + img_feat, 0.0)
    if n_layers == 1:
        return h
    return jnp.maximum(adj @ (h @ w2.T), 0.0)


def _make_inputs(key, n, nfeat, nhid):
    kx, ka, ki = jax.random.split(key, 3)
    x = jax.random.normal(kx, (n, nfeat), jnp.float32)
    a = (jax.random.uniform(ka, (n, n)) > 0.5).astype(jnp.float32)
    adj = a + a.T + jnp.eye(n, dtype=jnp.float32)
    adj = adj / adj.sum(axis=1, keepdims=True)       # row-normalized adjacency
    img_feat = jax.random.normal(ki, (n, nhid), jnp.float32)
    return x, adj, img_feat


# ---------------- Main ----------------

if __name__ == "__main__":
    N, NFEAT, NHID, NCLASS = 8, 16, 32, 8
    x, adj, img_feat = _make_inputs(jax.random.PRNGKey(0), N, NFEAT, NHID)

    # 1) exact correctness: f32 compute path, tight tolerance
    m32 = GCNIPallas(NFEAT, NHID, NCLASS, n_layers=1, compute_dtype=jnp.float32)
    out32 = jax.block_until_ready(m32(x, adj, img_feat))
    ref32 = gcni_ref(x, adj, img_feat, m32.w1, m32.w2, 1)
    assert out32.shape == (N, NHID), out32.shape
    assert jnp.allclose(out32, ref32, atol=1e-5, rtol=1e-5), "f32 mismatch vs reference"

    # 2) performance default: bf16 matmuls with f32 accumulation (looser tolerance)
    m = GCNIPallas(NFEAT, NHID, NCLASS, n_layers=1)
    out = jax.block_until_ready(m(x, adj, img_feat))
    ref1 = gcni_ref(x, adj, img_feat, m.w1, m.w2, 1)
    assert out.shape == (N, NHID), out.shape
    assert jnp.allclose(out, ref1, atol=5e-2, rtol=5e-2), "bf16 mismatch vs reference"

    # 3) 2-layer path (second fused kernel, no residual)
    m2 = GCNIPallas(NFEAT, NHID, NCLASS, n_layers=2)
    out2 = jax.block_until_ready(m2(x, adj, img_feat))
    ref2 = gcni_ref(x, adj, img_feat, m2.w1, m2.w2, 2)
    assert out2.shape == (N, NCLASS), out2.shape
    assert jnp.allclose(out2, ref2, atol=5e-2, rtol=5e-2), "bf16 mismatch vs reference (2-layer)"

    # 4) multi-tile grid path with the VMEM xw-cache (several row & k tiles), f32 exact-ish
    Nl, NFl, NHl, NCl = 640, 200, 96, 40
    xl, adjl, imgl = _make_inputs(jax.random.PRNGKey(1), Nl, NFl, NHl)
    ml = GCNIPallas(NFl, NHl, NCl, n_layers=2, compute_dtype=jnp.float32)
    outl = jax.block_until_ready(ml(xl, adjl, imgl))
    refl = gcni_ref(xl, adjl, imgl, ml.w1, ml.w2, 2)
    assert outl.shape == (Nl, NCl), outl.shape
    assert jnp.allclose(outl, refl, atol=1e-4, rtol=1e-4), "f32 mismatch (multi-tile grid)"

    # 5) multi-tile grid, bf16 compute path with the VMEM xw-cache
    mlb = GCNIPallas(NFl, NHl, NCl, n_layers=2)
    outlb = jax.block_until_ready(mlb(xl, adjl, imgl))
    reflb = gcni_ref(xl, adjl, imgl, mlb.w1, mlb.w2, 2)
    assert outlb.shape == (Nl, NCl), outlb.shape
    assert jnp.allclose(outlb, reflb, atol=1e-1, rtol=1e-1), "bf16 mismatch (multi-tile grid)"

    print("KERNEL_OK")
</pallas_src>

<mosaic_0001>
module attributes {stable_mosaic.version = 11 : i64} {
  func.func @kernel(%arg0: i32, %arg1: i32, %arg2: memref<8x128xf32, #tpu.memory_space<vmem>>, %arg3: memref<128x128xf32, #tpu.memory_space<vmem>>, %arg4: memref<128x128xf32, #tpu.memory_space<vmem>>, %arg5: memref<8x128xf32, #tpu.memory_space<vmem>>, %arg6: memref<8x128xf32, #tpu.memory_space<vmem>>, %arg7: memref<8x128xf32, #tpu.memory_space<vmem>>) attributes {dimension_semantics = [#tpu.dimension_semantics<parallel>, #tpu.dimension_semantics<arbitrary>], iteration_bounds = array<i64: 1, 1>, scalar_prefetch = 0 : i64, scratch_operands = 1 : i64, tpu.core_type = #tpu.core_type<tc>, window_params = [{transform_indices = @transform_0, window_bounds = array<i64: 8, 128>}, {transform_indices = @transform_1, window_bounds = array<i64: 128, 128>}, {pipeline_mode = #tpu.pipeline_mode<synchronous>, transform_indices = @transform_2, window_bounds = array<i64: 128, 128>}, {transform_indices = @transform_3, window_bounds = array<i64: 8, 128>}, {transform_indices = @transform_4, window_bounds = array<i64: 8, 128>}]} {
    %c0_i32 = arith.constant 0 : i32
    %0 = arith.cmpi eq, %arg1, %c0_i32 : i32
    %1 = arith.extui %0 : i1 to i32
    %c0_i32_0 = arith.constant 0 : i32
    %2 = arith.cmpi ne, %1, %c0_i32_0 : i32
    scf.if %2 {
      %cst_13 = arith.constant 0.000000e+00 : f32
      %14 = vector.broadcast %cst_13 : f32 to vector<8x128xf32>
      %c0_14 = arith.constant 0 : index
      %c0_15 = arith.constant 0 : index
      %15 = vector.load %arg7[%c0_14, %c0_15] : memref<8x128xf32, #tpu.memory_space<vmem>>, vector<8x128xf32>
      tpu.vector_store %arg7[%c0_14, %c0_15], %14 {strides = array<i32>} : memref<8x128xf32, #tpu.memory_space<vmem>>, vector<8x128xf32>,
    } else {
    }
    %c0 = arith.constant 0 : index
    %c0_1 = arith.constant 0 : index
    %3 = vector.load %arg3[%c0, %c0_1] : memref<128x128xf32, #tpu.memory_space<vmem>>, vector<128x128xf32>
    %c0_2 = arith.constant 0 : index
    %c0_3 = arith.constant 0 : index
    %4 = vector.load %arg4[%c0_2, %c0_3] : memref<128x128xf32, #tpu.memory_space<vmem>>, vector<128x128xf32>
    %cst = arith.constant dense<0.000000e+00> : vector<128x128xf32>
    %5 = tpu.matmul %3, %4, %cst {dimension_numbers = #tpu.dot_dimension_numbers<[1], [0], [0], [1], [0, 0, 1, 1], [], []>} : vector<128x128xf32>, vector<128x128xf32>, vector<128x128xf32> -> vector<128x128xf32>
    %c0_4 = arith.constant 0 : index
    %c0_5 = arith.constant 0 : index
    %6 = vector.load %arg7[%c0_4, %c0_5] : memref<8x128xf32, #tpu.memory_space<vmem>>, vector<8x128xf32>
    %c0_6 = arith.constant 0 : index
    %c0_7 = arith.constant 0 : index
    %7 = vector.load %arg2[%c0_6, %c0_7] : memref<8x128xf32, #tpu.memory_space<vmem>>, vector<8x128xf32>
    %cst_8 = arith.constant dense<0.000000e+00> : vector<8x128xf32>
    %8 = tpu.matmul %7, %5, %cst_8 {dimension_numbers = #tpu.dot_dimension_numbers<[1], [0], [0], [1], [0, 0, 1, 1], [], []>} : vector<8x128xf32>, vector<128x128xf32>, vector<8x128xf32> -> vector<8x128xf32>
    %9 = arith.addf %6, %8 : vector<8x128xf32>
    %c0_9 = arith.constant 0 : index
    %c0_10 = arith.constant 0 : index
    %10 = vector.load %arg7[%c0_9, %c0_10] : memref<8x128xf32, #tpu.memory_space<vmem>>, vector<8x128xf32>
    tpu.vector_store %arg7[%c0_9, %c0_10], %9 {strides = array<i32>} : memref<8x128xf32, #tpu.memory_space<vmem>>, vector<8x128xf32>,
    %c0_i32_11 = arith.constant 0 : i32
    %11 = arith.cmpi eq, %arg1, %c0_i32_11 : i32
    %12 = arith.extui %11 : i1 to i32
    %c0_i32_12 = arith.constant 0 : i32
    %13 = arith.cmpi ne, %12, %c0_i32_12 : i32
    scf.if %13 {
      %c0_13 = arith.constant 0 : index
      %c0_14 = arith.constant 0 : index
      %14 = vector.load %arg7[%c0_13, %c0_14] : memref<8x128xf32, #tpu.memory_space<vmem>>, vector<8x128xf32>
      %c0_15 = arith.constant 0 : index
      %c0_16 = arith.constant 0 : index
      %15 = vector.load %arg5[%c0_15, %c0_16] : memref<8x128xf32, #tpu.memory_space<vmem>>, vector<8x128xf32>
      %16 = arith.addf %14, %15 : vector<8x128xf32>
      %cst_17 = arith.constant 0.000000e+00 : f32
      %17 = vector.broadcast %cst_17 : f32 to vector<8x128xf32>
      %18 = arith.maximumf %16, %17 : vector<8x128xf32>
      %c0_18 = arith.constant 0 : index
      %c0_19 = arith.constant 0 : index
      %19 = vector.load %arg6[%c0_18, %c0_19] : memref<8x128xf32, #tpu.memory_space<vmem>>, vector<8x128xf32>
      tpu.vector_store %arg6[%c0_18, %c0_19], %18 {strides = array<i32>} : memref<8x128xf32, #tpu.memory_space<vmem>>, vector<8x128xf32>,
    } else {
    }
    return
  }
  func.func @transform_0(%arg0: i32, %arg1: i32) -> (i32, i32) {
    %c0_i32 = arith.constant 0 : i32
    return %arg0, %arg1 : i32, i32
  }
  func.func @transform_1(%arg0: i32, %arg1: i32) -> (i32, i32) {
    %c0_i32 = arith.constant 0 : i32
    %c0_i32_0 = arith.constant 0 : i32
    return %arg1, %c0_i32 : i32, i32
  }
  func.func @transform_2(%arg0: i32, %arg1: i32) -> (i32, i32) {
    %c0_i32 = arith.constant 0 : i32
    %c0_i32_0 = arith.constant 0 : i32
    %c0_i32_1 = arith.constant 0 : i32
    return %c0_i32, %c0_i32_0 : i32, i32
  }
  func.func @transform_3(%arg0: i32, %arg1: i32) -> (i32, i32) {
    %c0_i32 = arith.constant 0 : i32
    %c0_i32_0 = arith.constant 0 : i32
    return %arg0, %c0_i32 : i32, i32
  }
  func.func @transform_4(%arg0: i32, %arg1: i32) -> (i32, i32) {
    %c0_i32 = arith.constant 0 : i32
    %c0_i32_0 = arith.constant 0 : i32
    return %arg0, %c0_i32 : i32, i32
  }
}

</mosaic_0001>

<llo_original>
// kernel: tpu_custom_call.1
$region0: #{tpu_custom_call.1}
  #allocation0 [shape = 'u32[]', space=smem, size = 0x4, offset = 0x4, fixed_abs, tag = 'smem constant byte address 0x4 - core index']
  #allocation1 [shape = 'u32[144,128]{1,0:T(1,128)}', space=vmem, size = 0x12000, scoped, tag = 'internal scratch']
  #allocation2 [shape = 'f32[8,128]{1,0:T(8,128)}', space=vmem, size = 0x1000, scoped, tag = 'scratch operand']
  %s0 = inlined_call_operand.hbm [shape: f32[8,128], index: 0, kind: input, shape index: {}]
  %s1 = inlined_call_operand.hbm [shape: f32[128,128], index: 1, kind: input, shape index: {}]
  %s2 = inlined_call_operand.hbm [shape: f32[128,128], index: 2, kind: input, shape index: {}]
  %s3 = inlined_call_operand.hbm [shape: f32[8,128], index: 3, kind: input, shape index: {}]
  %s4 = inlined_call_operand.hbm [shape: f32[8,128], index: 4, kind: output, shape index: {}]
  %s5 = sld [smem:[#allocation0]]
  $region50: #{tpu_custom_call.1} parent=0
    _
  %s7 = ssub.s32 1, %s5
  %s8 = scalar_select 0, %s7, %s5
  $region1: #{tpu_custom_call.1} parent=0
    #allocation3 [shape = 'u8[4096]{0}', space=vmem, size = 0x1000, scoped, tag = 'input window, operand 0, single buffered']
    #allocation4 [shape = 's32[1]{0}', space=sflag, size = 0x4, scoped, tag = 'scoped memory for tpu_custom_call.1']
    #allocation5 [shape = 's32[1]{0}', space=sflag, size = 0x4, scoped, tag = 'scoped memory for tpu_custom_call.1']
    #allocation6 [shape = 'u8[65536]{0}', space=vmem, size = 0x10000, scoped, tag = 'input window, operand 1, single buffered']
    #allocation7 [shape = 's32[1]{0}', space=sflag, size = 0x4, scoped, tag = 'scoped memory for tpu_custom_call.1']
    #allocation8 [shape = 'u8[65536]{0}', space=vmem, size = 0x10000, scoped, tag = 'input window, operand 2, single buffered']
    #allocation9 [shape = 'u8[4096]{0}', space=vmem, size = 0x1000, scoped, tag = 'input window, operand 3, single buffered']
    #allocation10 [shape = 's32[1]{0}', space=sflag, size = 0x4, scoped, tag = 'scoped memory for tpu_custom_call.1']
    #allocation11 [shape = 'u8[4096]{0}', space=vmem, size = 0x1000, scoped, tag = 'output window, operand 0, single buffered']
    %9 = vsyncpa [#allocation4], 0
    %10 = vsyncpa [#allocation7], 0
    %11 = vsyncpa [#allocation10], 0
    %12 = vsyncpa [#allocation5], 0
    // Predicated region
    $region2: #{tpu_custom_call.1} parent=1 // pred_check
      _
    $region3: #{tpu_custom_call.1} parent=1 // pred_check_branch
      %14 = sbr.rel (0) target = $region5
    $region4: #{tpu_custom_call.1} parent=1 // pred_region
      %s16 = ssub.s32 128, 128
      %17 = vsyncadd [#allocation4], %s16
      %s19 = sshll.u32 [#allocation3], 4
      %s20 = int_to_ptr.vmem [resolvable:$true] %s19
      %22 = dma.hbm_to_vmem [thread:$0]  %s0, 128, %s20, [#allocation4]
    $region5: #{tpu_custom_call.1} parent=1 // pred_fallthru
      _
    // Predicated region
    $region6: #{tpu_custom_call.1} parent=1 // pred_check
      _
    $region7: #{tpu_custom_call.1} parent=1 // pred_check_branch
      %24 = sbr.rel (0) target = $region9
    $region8: #{tpu_custom_call.1} parent=1 // pred_region
      %s26 = ssub.s32 2048, 2048
      %27 = vsyncadd [#allocation7], %s26
      %s28 = sshll.u32 [#allocation6], 4
      %s29 = int_to_ptr.vmem [resolvable:$true] %s28
      %34 = dma.hbm_to_vmem [thread:$0]  %s1, 2048, %s29, [#allocation7], 128, 128, 8
    $region9: #{tpu_custom_call.1} parent=1 // pred_fallthru
      _
    // Predicated region
    $region10: #{tpu_custom_call.1} parent=1 // pred_check
      _
    $region11: #{tpu_custom_call.1} parent=1 // pred_check_branch
      %36 = sbr.rel (0) target = $region13
    $region12: #{tpu_custom_call.1} parent=1 // pred_region
      %s38 = ssub.s32 2048, 2048
      %39 = vsyncadd [#allocation7], %s38
      %s40 = sshll.u32 [#allocation8], 4
      %s41 = int_to_ptr.vmem [resolvable:$true] %s40
      %46 = dma.hbm_to_vmem [thread:$0]  %s2, 2048, %s41, [#allocation7], 128, 128, 8
    $region13: #{tpu_custom_call.1} parent=1 // pred_fallthru
      _
    // Predicated region
    $region14: #{tpu_custom_call.1} parent=1 // pred_check
      _
    $region15: #{tpu_custom_call.1} parent=1 // pred_check_branch
      %48 = sbr.rel (0) target = $region17
    $region16: #{tpu_custom_call.1} parent=1 // pred_region
      %s50 = ssub.s32 128, 128
      %51 = vsyncadd [#allocation10], %s50
      %s53 = sshll.u32 [#allocation9], 4
      %s54 = int_to_ptr.vmem [resolvable:$true] %s53
      %56 = dma.hbm_to_vmem [thread:$0]  %s3, 128, %s54, [#allocation10]
    $region17: #{tpu_custom_call.1} parent=1 // pred_fallthru
      _
    // Predicated region
    $region18: #{tpu_custom_call.1} parent=1 // pred_check
      _
    $region19: #{tpu_custom_call.1} parent=1 // pred_check_branch
      %58 = sbr.rel (0) target = $region21
    $region20: #{tpu_custom_call.1} parent=1 // pred_region
      %59 = dma.done [#allocation4], 128
    $region21: #{tpu_custom_call.1} parent=1 // pred_fallthru
      _
    // Predicated region
    $region22: #{tpu_custom_call.1} parent=1 // pred_check
      _
    $region23: #{tpu_custom_call.1} parent=1 // pred_check_branch
      %61 = sbr.rel (0) target = $region25
    $region24: #{tpu_custom_call.1} parent=1 // pred_region
      %62 = dma.done [#allocation7], 2048
    $region25: #{tpu_custom_call.1} parent=1 // pred_fallthru
      _
    // Predicated region
    $region26: #{tpu_custom_call.1} parent=1 // pred_check
      _
    $region27: #{tpu_custom_call.1} parent=1 // pred_check_branch
      %64 = sbr.rel (0) target = $region29
    $region28: #{tpu_custom_call.1} parent=1 // pred_region
      %65 = dma.done [#allocation7], 2048
    $region29: #{tpu_custom_call.1} parent=1 // pred_fallthru
      _
    // Predicated region
    $region30: #{tpu_custom_call.1} parent=1 // pred_check
      _
    $region31: #{tpu_custom_call.1} parent=1 // pred_check_branch
      %67 = sbr.rel (0) target = $region33
    $region32: #{tpu_custom_call.1} parent=1 // pred_region
      %68 = dma.done [#allocation10], 128
    $region33: #{tpu_custom_call.1} parent=1 // pred_fallthru
      _
    %p69 = scmp.eq.s32.totalorder 0, 0
    // Predicated region
    $region34: #{tpu_custom_call.1} parent=1 // pred_check
      %p70 = pneg %p69
    $region35: #{tpu_custom_call.1} parent=1 // pred_check_branch
      %72 = sbr.rel (%p70) target = $region37
    $region36: #{tpu_custom_call.1} parent=1 // pred_region
      %73 = vst [vmem:[#allocation2] sm:$0xff] 0.0
    $region37: #{tpu_custom_call.1} parent=1 // pred_fallthru
      _
    %v74 = vld [vmem:[#allocation6] sm:$0xff]
    %v75 = vld [vmem:[#allocation6 + $0x8] sm:$0xff]
    %v76 = vld [vmem:[#allocation6 + $0x10] sm:$0xff]
    %v77 = vld [vmem:[#allocation6 + $0x18] sm:$0xff]
    %v78 = vld [vmem:[#allocation6 + $0x20] sm:$0xff]
    %v79 = vld [vmem:[#allocation6 + $0x28] sm:$0xff]
    %v80 = vld [vmem:[#allocation6 + $0x30] sm:$0xff]
    %v81 = vld [vmem:[#allocation6 + $0x38] sm:$0xff]
    %v82 = vld [vmem:[#allocation6 + $0x40] sm:$0xff]
    %v83 = vld [vmem:[#allocation6 + $0x48] sm:$0xff]
    %v84 = vld [vmem:[#allocation6 + $0x50] sm:$0xff]
    %v85 = vld [vmem:[#allocation6 + $0x58] sm:$0xff]
    %v86 = vld [vmem:[#allocation6 + $0x60] sm:$0xff]
    %v87 = vld [vmem:[#allocation6 + $0x68] sm:$0xff]
    %v88 = vld [vmem:[#allocation6 + $0x70] sm:$0xff]
    %v89 = vld [vmem:[#allocation6 + $0x78] sm:$0xff]
    %v90 = vld [vmem:[#allocation8] sm:$0xff]
    %v91 = vld [vmem:[#allocation8 + $0x8] sm:$0xff]
    %v92 = vld [vmem:[#allocation8 + $0x10] sm:$0xff]
    %v93 = vld [vmem:[#allocation8 + $0x18] sm:$0xff]
    %v94 = vld [vmem:[#allocation8 + $0x20] sm:$0xff]
    %v95 = vld [vmem:[#allocation8 + $0x28] sm:$0xff]
    %v96 = vld [vmem:[#allocation8 + $0x30] sm:$0xff]
    %v97 = vld [vmem:[#allocation8 + $0x38] sm:$0xff]
    %v98 = vld [vmem:[#allocation8 + $0x40] sm:$0xff]
    %v99 = vld [vmem:[#allocation8 + $0x48] sm:$0xff]
    %v100 = vld [vmem:[#allocation8 + $0x50] sm:$0xff]
    %v101 = vld [vmem:[#allocation8 + $0x58] sm:$0xff]
    %v102 = vld [vmem:[#allocation8 + $0x60] sm:$0xff]
    %v103 = vld [vmem:[#allocation8 + $0x68] sm:$0xff]
    %v104 = vld [vmem:[#allocation8 + $0x70] sm:$0xff]
    %v105 = vld [vmem:[#allocation8 + $0x78] sm:$0xff]
    %106 = vmatprep.subr.mxu0 0.0
    %107 = vmatpush1.msra.mxu0 %v105
    %108 = vmatprep.subr.mxu0 0.0
    %109 = vmatpush1.msra.mxu0 %v104
    %110 = vmatprep.subr.mxu0 0.0
    %111 = vmatpush1.msra.mxu0 %v103
    %112 = vmatprep.subr.mxu0 0.0
    %113 = vmatpush1.msra.mxu0 %v102
    %114 = vmatprep.subr.mxu0 0.0
    %115 = vmatpush1.msra.mxu0 %v101
    %116 = vmatprep.subr.mxu0 0.0
    %117 = vmatpush1.msra.mxu0 %v100
    %118 = vmatprep.subr.mxu0 0.0
    %119 = vmatpush1.msra.mxu0 %v99
    %120 = vmatprep.subr.mxu0 0.0
    %121 = vmatpush1.msra.mxu0 %v98
    %122 = vmatprep.subr.mxu0 0.0
    %123 = vmatpush1.msra.mxu0 %v97
    %124 = vmatprep.subr.mxu0 0.0
    %125 = vmatpush1.msra.mxu0 %v96
    %126 = vmatprep.subr.mxu0 0.0
    %127 = vmatpush1.msra.mxu0 %v95
    %128 = vmatprep.subr.mxu0 0.0
    %129 = vmatpush1.msra.mxu0 %v94
    %130 = vmatprep.subr.mxu0 0.0
    %131 = vmatpush1.msra.mxu0 %v93
    %132 = vmatprep.subr.mxu0 0.0
    %133 = vmatpush1.msra.mxu0 %v92
    %134 = vmatprep.subr.mxu0 0.0
    %135 = vmatpush1.msra.mxu0 %v91
    %136 = vmatprep.subr.mxu0 0.0
    %137 = vmatpush1.msra.mxu0 %v90
    %138 = vmatprep.subr.mxu0 0.0
    %139 = vmatpush2.msra.mxu0 0.0
    %140 = vmatprep.subr.mxu0 0.0
    %141 = vmatpush2.msra.mxu0 0.0
    %142 = vmatprep.subr.mxu0 0.0
    %143 = vmatpush2.msra.mxu0 0.0
    %144 = vmatprep.subr.mxu0 0.0
    %145 = vmatpush2.msra.mxu0 0.0
    %146 = vmatprep.subr.mxu0 0.0
    %147 = vmatpush2.msra.mxu0 0.0
    %148 = vmatprep.subr.mxu0 0.0
    %149 = vmatpush2.msra.mxu0 0.0
    %150 = vmatprep.subr.mxu0 0.0
    %151 = vmatpush2.msra.mxu0 0.0
    %152 = vmatprep.subr.mxu0 0.0
    %153 = vmatpush2.msra.mxu0 0.0
    %154 = vmatprep.subr.mxu0 0.0
    %155 = vmatpush2.msra.mxu0 0.0
    %156 = vmatprep.subr.mxu0 0.0
    %157 = vmatpush2.msra.mxu0 0.0
    %158 = vmatprep.subr.mxu0 0.0
    %159 = vmatpush2.msra.mxu0 0.0
    %160 = vmatprep.subr.mxu0 0.0
    %161 = vmatpush2.msra.mxu0 0.0
    %162 = vmatprep.subr.mxu0 0.0
    %163 = vmatpush2.msra.mxu0 0.0
    %164 = vmatprep.subr.mxu0 0.0
    %165 = vmatpush2.msra.mxu0 0.0
    %166 = vmatprep.subr.mxu0 0.0
    %167 = vmatpush2.msra.mxu0 0.0
    %168 = vmatprep.subr.mxu0 0.0
    %169 = vmatpush2.msra.mxu0 0.0
    %170 = vmatprep.mubr.f32.mxu0 0.0
    %171 = vmatmul.mubr.f32.gmra.mxu0 %v74
    %v172 = vpop.f32.mrf.mxu0
    %v173 = vadd.f32 0.0, %v172
    %v174 = vpop.f32.mrf.mxu0
    %175 = vmatprep.mubr.f32.mxu0 0.0
    %176 = vmatmul.mubr.f32.gmra.mxu0 %v75
    %v177 = vpop.f32.mrf.mxu0
    %v178 = vadd.f32 0.0, %v177
    %v179 = vpop.f32.mrf.mxu0
    %180 = vmatprep.mubr.f32.mxu0 0.0
    %181 = vmatmul.mubr.f32.gmra.mxu0 %v76
    %v182 = vpop.f32.mrf.mxu0
    %v183 = vadd.f32 0.0, %v182
    %v184 = vpop.f32.mrf.mxu0
    %185 = vmatprep.mubr.f32.mxu0 0.0
    %186 = vmatmul.mubr.f32.gmra.mxu0 %v77
    %v187 = vpop.f32.mrf.mxu0
    %v188 = vadd.f32 0.0, %v187
    %v189 = vpop.f32.mrf.mxu0
    %190 = vmatprep.mubr.f32.mxu0 0.0
    %191 = vmatmul.mubr.f32.gmra.mxu0 %v78
    %v192 = vpop.f32.mrf.mxu0
    %v193 = vadd.f32 0.0, %v192
    %v194 = vpop.f32.mrf.mxu0
    %195 = vmatprep.mubr.f32.mxu0 0.0
    %196 = vmatmul.mubr.f32.gmra.mxu0 %v79
    %v197 = vpop.f32.mrf.mxu0
    %v198 = vadd.f32 0.0, %v197
    %v199 = vpop.f32.mrf.mxu0
    %200 = vmatprep.mubr.f32.mxu0 0.0
    %201 = vmatmul.mubr.f32.gmra.mxu0 %v80
    %v202 = vpop.f32.mrf.mxu0
    %v203 = vadd.f32 0.0, %v202
    %v204 = vpop.f32.mrf.mxu0
    %205 = vmatprep.mubr.f32.mxu0 0.0
    %206 = vmatmul.mubr.f32.gmra.mxu0 %v81
    %v207 = vpop.f32.mrf.mxu0
    %v208 = vadd.f32 0.0, %v207
    %v209 = vpop.f32.mrf.mxu0
    %210 = vmatprep.mubr.f32.mxu0 0.0
    %211 = vmatmul.mubr.f32.gmra.mxu0 %v82
    %v212 = vpop.f32.mrf.mxu0
    %v213 = vadd.f32 0.0, %v212
    %v214 = vpop.f32.mrf.mxu0
    %215 = vmatprep.mubr.f32.mxu0 0.0
    %216 = vmatmul.mubr.f32.gmra.mxu0 %v83
    %v217 = vpop.f32.mrf.mxu0
    %v218 = vadd.f32 0.0, %v217
    %v219 = vpop.f32.mrf.mxu0
    %220 = vmatprep.mubr.f32.mxu0 0.0
    %221 = vmatmul.mubr.f32.gmra.mxu0 %v84
    %v222 = vpop.f32.mrf.mxu0
    %v223 = vadd.f32 0.0, %v222
    %v224 = vpop.f32.mrf.mxu0
    %225 = vmatprep.mubr.f32.mxu0 0.0
    %226 = vmatmul.mubr.f32.gmra.mxu0 %v85
    %v227 = vpop.f32.mrf.mxu0
    %v228 = vadd.f32 0.0, %v227
    %v229 = vpop.f32.mrf.mxu0
    %230 = vmatprep.mubr.f32.mxu0 0.0
    %231 = vmatmul.mubr.f32.gmra.mxu0 %v86
    %v232 = vpop.f32.mrf.mxu0
    %v233 = vadd.f32 0.0, %v232
    %v234 = vpop.f32.mrf.mxu0
    %235 = vmatprep.mubr.f32.mxu0 0.0
    %236 = vmatmul.mubr.f32.gmra.mxu0 %v87
    %v237 = vpop.f32.mrf.mxu0
    %v238 = vadd.f32 0.0, %v237
    %v239 = vpop.f32.mrf.mxu0
    %240 = vmatprep.mubr.f32.mxu0 0.0
    %241 = vmatmul.mubr.f32.gmra.mxu0 %v88
    %v242 = vpop.f32.mrf.mxu0
    %v243 = vadd.f32 0.0, %v242
    %v244 = vpop.f32.mrf.mxu0
    %245 = vmatprep.mubr.f32.mxu0 0.0
    %246 = vmatmul.mubr.f32.gmra.mxu0 %v89
    %v247 = vpop.f32.mrf.mxu0
    %v248 = vadd.f32 0.0, %v247
    %v249 = vpop.f32.mrf.mxu0
    %250 = vdwg.mxu0
    %v251 = vld [vmem:[#allocation2] sm:$0xff]
    %v252 = vld [vmem:[#allocation3] sm:$0xff]
    %253 = vmatprep.subr.mxu0 0.0
    %254 = vmatpush1.msra.mxu0 %v248
    %255 = vmatprep.subr.mxu0 0.0
    %256 = vmatpush1.msra.mxu0 %v243
    %257 = vmatprep.subr.mxu0 0.0
    %258 = vmatpush1.msra.mxu0 %v238
    %259 = vmatprep.subr.mxu0 0.0
    %260 = vmatpush1.msra.mxu0 %v233
    %261 = vmatprep.subr.mxu0 0.0
    %262 = vmatpush1.msra.mxu0 %v228
    %263 = vmatprep.subr.mxu0 0.0
    %264 = vmatpush1.msra.mxu0 %v223
    %265 = vmatprep.subr.mxu0 0.0
    %266 = vmatpush1.msra.mxu0 %v218
    %267 = vmatprep.subr.mxu0 0.0
    %268 = vmatpush1.msra.mxu0 %v213
    %269 = vmatprep.subr.mxu0 0.0
    %270 = vmatpush1.msra.mxu0 %v208
    %271 = vmatprep.subr.mxu0 0.0
    %272 = vmatpush1.msra.mxu0 %v203
    %273 = vmatprep.subr.mxu0 0.0
    %274 = vmatpush1.msra.mxu0 %v198
    %275 = vmatprep.subr.mxu0 0.0
    %276 = vmatpush1.msra.mxu0 %v193
    %277 = vmatprep.subr.mxu0 0.0
    %278 = vmatpush1.msra.mxu0 %v188
    %279 = vmatprep.subr.mxu0 0.0
    %280 = vmatpush1.msra.mxu0 %v183
    %281 = vmatprep.subr.mxu0 0.0
    %282 = vmatpush1.msra.mxu0 %v178
    %283 = vmatprep.subr.mxu0 0.0
    %284 = vmatpush1.msra.mxu0 %v173
    %285 = vmatprep.subr.mxu0 0.0
    %286 = vmatpush2.msra.mxu0 0.0
    %287 = vmatprep.subr.mxu0 0.0
    %288 = vmatpush2.msra.mxu0 0.0
    %289 = vmatprep.subr.mxu0 0.0
    %290 = vmatpush2.msra.mxu0 0.0
    %291 = vmatprep.subr.mxu0 0.0
    %292 = vmatpush2.msra.mxu0 0.0
    %293 = vmatprep.subr.mxu0 0.0
    %294 = vmatpush2.msra.mxu0 0.0
    %295 = vmatprep.subr.mxu0 0.0
    %296 = vmatpush2.msra.mxu0 0.0
    %297 = vmatprep.subr.mxu0 0.0
    %298 = vmatpush2.msra.mxu0 0.0
    %299 = vmatprep.subr.mxu0 0.0
    %300 = vmatpush2.msra.mxu0 0.0
    %301 = vmatprep.subr.mxu0 0.0
    %302 = vmatpush2.msra.mxu0 0.0
    %303 = vmatprep.subr.mxu0 0.0
    %304 = vmatpush2.msra.mxu0 0.0
    %305 = vmatprep.subr.mxu0 0.0
    %306 = vmatpush2.msra.mxu0 0.0
    %307 = vmatprep.subr.mxu0 0.0
    %308 = vmatpush2.msra.mxu0 0.0
    %309 = vmatprep.subr.mxu0 0.0
    %310 = vmatpush2.msra.mxu0 0.0
    %311 = vmatprep.subr.mxu0 0.0
    %312 = vmatpush2.msra.mxu0 0.0
    %313 = vmatprep.subr.mxu0 0.0
    %314 = vmatpush2.msra.mxu0 0.0
    %315 = vmatprep.subr.mxu0 0.0
    %316 = vmatpush2.msra.mxu0 0.0
    %317 = vmatprep.mubr.f32.mxu0 0.0
    %318 = vmatmul.mubr.f32.gmra.mxu0 %v252
    %v319 = vpop.f32.mrf.mxu0
    %v320 = vadd.f32 0.0, %v319
    %v321 = vpop.f32.mrf.mxu0
    %322 = vdwg.mxu0
    %v323 = vadd.f32 %v251, %v320
    %324 = vst [vmem:[#allocation2] sm:$0xff] %v323
    // Predicated region
    $region38: #{tpu_custom_call.1} parent=1 // pred_check
      %p325 = pneg %p69
    $region39: #{tpu_custom_call.1} parent=1 // pred_check_branch
      %327 = sbr.rel (%p325) target = $region41
    $region40: #{tpu_custom_call.1} parent=1 // pred_region
      %v328 = vld [vmem:[#allocation2] sm:$0xff]
      %v329 = vld [vmem:[#allocation9] sm:$0xff]
      %v330 = vadd.f32 %v328, %v329
      %v331 = vmax.f32 %v330, 0.0
      %332 = vst [vmem:[#allocation11] sm:$0xff] %v331
    $region41: #{tpu_custom_call.1} parent=1 // pred_fallthru
      _
    // Predicated region
    $region42: #{tpu_custom_call.1} parent=1 // pred_check
      _
    $region43: #{tpu_custom_call.1} parent=1 // pred_check_branch
      %334 = sbr.rel (0) target = $region45
    $region44: #{tpu_custom_call.1} parent=1 // pred_region
      %s336 = ssub.s32 128, 128
      %337 = vsyncadd [#allocation5], %s336
      %s339 = sshll.u32 [#allocation11], 4
      %s340 = int_to_ptr.vmem [resolvable:$true] %s339
      %342 = dma.vmem_to_hbm [thread:$0]  %s340, 128, %s4, [#allocation5]
    $region45: #{tpu_custom_call.1} parent=1 // pred_fallthru
      _
    // Predicated region
    $region46: #{tpu_custom_call.1} parent=1 // pred_check
      _
    $region47: #{tpu_custom_call.1} parent=1 // pred_check_branch
      %344 = sbr.rel (0) target = $region49
    $region48: #{tpu_custom_call.1} parent=1 // pred_region
      %345 = dma.done [#allocation5], 128
    $region49: #{tpu_custom_call.1} parent=1 // pred_fallthru
      _
    %346 = vsyncpa [#allocation4], 1
    %347 = vsyncpa [#allocation7], 1
    %348 = vsyncpa [#allocation10], 1
    %349 = vsyncpa [#allocation5], 1

</llo_original>
